<compile_context>
chip_gen: v6e
topology: v6e:2x2x1
jax: 0.10.0
libtpu: 0.0.40
codegen_flags: <defaults>
</compile_context>

<pallas_src>
import math
from functools import partial

import jax
import jax.numpy as jnp
from jax.experimental import pallas as pl
from jax.experimental.pallas import tpu as pltpu


_LANE = 128
_MAX_TILE_ROWS = 8192  # keep several grid steps for pipelining / v7x 2-core split


def _round_up(x: int, m: int) -> int:
    return ((x + m - 1) // m) * m


def _vmem_capacity_bytes() -> int:
    """Generation-aware VMEM capacity (v5e/v6e: 128 MiB, v7x: 64 MiB/core)."""
    try:
        return int(pltpu.get_tpu_info().vmem_capacity_bytes)
    except Exception:
        return 64 * 1024 * 1024  # conservative fallback (v7x per-core VMEM)


def _std_normal_kernel(x_ref, out_ref, *, log_norm: float, apply_exp: bool):
    """Row-wise standard-normal log-prob (optionally exponentiated).

    x_ref:   (TB, D)              VMEM input tile (rows on sublanes, D on lanes)
    out_ref: (1, TB//128, 128)    lane-dense output tile, one value per row
    """
    x = x_ref[...].astype(jnp.float32)
    # log N(x; 0, I) = -0.5*||x||^2 - (D/2)*log(2*pi); constant folded at trace time.
    val = -0.5 * jnp.sum(x * x, axis=1) - log_norm        # (TB,)
    if apply_exp:
        val = jnp.exp(val)                                 # EUP slot: free vs. HBM streaming
    # Dense store: every lane of the output block is written (no masked vst).
    out_ref[...] = val.reshape(out_ref.shape)


class Distribution:
    """JAX/Pallas port of the abstract Distribution base class.

    forward(x, condition) == prob(x, condition) == exp(log_prob(x, condition)).
    Concrete density: unconditional standard normal over dims_in, with the
    per-row reduction (+ optional exp) fused in a single Pallas TPU kernel.
    """

    def __init__(self, dims_in: int, dims_c=None):
        self.dims_in = dims_in
        self.dims_c = dims_c

    # ---- shape checking (mirrors the PyTorch _check_shape) -----------------
    def _check_shape(self, x, condition):
        if x.ndim != 2 or x.shape[1] != self.dims_in:
            raise ValueError("Wrong input shape")
        if self.dims_c is None:
            if condition is not None:
                raise ValueError("Distribution does not expect condition")
        else:
            if condition is None:
                raise ValueError("Distribution expects condition")
            if condition.ndim != 2 or condition.shape[1] != self.dims_c:
                raise ValueError("Wrong condition shape")

    # ---- hot path: Pallas kernel --------------------------------------------
    def _density_pallas(self, x, *, apply_exp: bool):
        batch, dims_in = x.shape

        capacity = _vmem_capacity_bytes()
        # f32 VMEM bytes per row of the input block, incl. implicit lane padding.
        row_bytes = 4 * _round_up(dims_in, _LANE)
        # Double-buffered input blocks should use at most ~1/4 of VMEM.
        budget = capacity // 4
        tb = budget // (2 * row_bytes)
        tb = max(_LANE, (tb // _LANE) * _LANE)             # multiple of 128 rows
        tb = min(tb, _MAX_TILE_ROWS, _round_up(batch, _LANE))

        # Pad the batch to a multiple of the tile (no whole-array fallback).
        b_pad = _round_up(batch, tb)
        n_blocks = b_pad // tb
        if b_pad != batch:
            x = jnp.pad(x, ((0, b_pad - batch), (0, 0)))

        in_block_bytes = 2 * tb * row_bytes                # double-buffered input
        vmem_limit = min(int(capacity * 0.9),
                         max(capacity // 2, in_block_bytes + (8 << 20)))

        log_norm = 0.5 * dims_in * math.log(2.0 * math.pi)

        out = pl.pallas_call(
            partial(_std_normal_kernel, log_norm=log_norm, apply_exp=apply_exp),
            out_shape=jax.ShapeDtypeStruct((n_blocks, tb // _LANE, _LANE),
                                           jnp.float32),
            grid_spec=pltpu.PrefetchScalarGridSpec(
                num_scalar_prefetch=0,
                grid=(n_blocks,),
                in_specs=[pl.BlockSpec((tb, dims_in), lambda i: (i, 0))],
                out_specs=pl.BlockSpec((1, tb // _LANE, _LANE),
                                       lambda i: (i, 0, 0)),
            ),
            compiler_params=pltpu.CompilerParams(
                dimension_semantics=("parallel",),
                vmem_limit_bytes=vmem_limit,
            ),
        )(x)
        # Free row-major flatten back to per-sample order, drop padding rows.
        return out.reshape(b_pad)[:batch]

    # ---- public API mirroring the PyTorch module ----------------------------
    def log_prob(self, x, condition=None):
        self._check_shape(x, condition)
        return self._density_pallas(x, apply_exp=False)

    def prob(self, x, condition=None):
        # NOTE: prob underflows to 0 in f32 for large dims_in / ||x||^2;
        # prefer log_prob for downstream numerics (inherent to returning prob).
        self._check_shape(x, condition)
        return self._density_pallas(x, apply_exp=True)

    def forward(self, x, condition=None):
        """Forward method just calls the prob function."""
        return self.prob(x, condition)

    def __call__(self, x, condition=None):
        return self.forward(x, condition)

    def sample(self, num_samples, condition=None, batch_size=None):
        # TODO(synk): abstract in the base class (no concrete _sample); not a kernel.
        raise NotImplementedError("sampling is not implemented")


if __name__ == "__main__":
    key = jax.random.PRNGKey(0)
    batch, dims_in = 8, 16
    x = jax.random.normal(key, (batch, dims_in), dtype=jnp.float32)

    dist = Distribution(dims_in=dims_in, dims_c=None)

    prob = jax.block_until_ready(dist(x))            # forward pass -> (batch,)
    logp = jax.block_until_ready(dist.log_prob(x))   # single kernel, no log(exp(.))

    # sanity check against plain-JAX reference
    ref_logp = -0.5 * jnp.sum(x * x, axis=1) - 0.5 * dims_in * math.log(2.0 * math.pi)
    ref_prob = jnp.exp(ref_logp)

    assert prob.shape == (batch,)
    assert logp.shape == (batch,)
    assert jnp.allclose(prob, ref_prob, rtol=1e-5, atol=1e-8)
    assert jnp.allclose(logp, ref_logp, rtol=1e-5, atol=1e-5)

    print("KERNEL_OK")
</pallas_src>

<mosaic_0001>
module attributes {stable_mosaic.version = 11 : i64} {
  func.func @_std_normal_kernel(%arg0: i32, %arg1: memref<128x16xf32, #tpu.memory_space<vmem>>, %arg2: memref<1x1x128xf32, #tpu.memory_space<vmem>>) attributes {dimension_semantics = [#tpu.dimension_semantics<parallel>], iteration_bounds = array<i64: 1>, scalar_prefetch = 0 : i64, scratch_operands = 0 : i64, tpu.core_type = #tpu.core_type<tc>, window_params = [{transform_indices = @transform_0, window_bounds = array<i64: 128, 16>}, {transform_indices = @transform_1, window_bounds = array<i64: 1, 1, 128>}]} {
    %c0 = arith.constant 0 : index
    %c0_0 = arith.constant 0 : index
    %0 = vector.load %arg1[%c0, %c0_0] : memref<128x16xf32, #tpu.memory_space<vmem>>, vector<128x16xf32>
    %1 = arith.mulf %0, %0 : vector<128x16xf32>
    %cst = arith.constant dense<0.000000e+00> : vector<128xf32>
    %2 = vector.multi_reduction <add>, %1, %cst [1] : vector<128x16xf32> to vector<128xf32>
    %cst_1 = arith.constant -5.000000e-01 : f32
    %3 = vector.broadcast %cst_1 : f32 to vector<128xf32>
    %4 = arith.mulf %3, %2 : vector<128xf32>
    %cst_2 = arith.constant 14.7030163 : f32
    %5 = vector.broadcast %cst_2 : f32 to vector<128xf32>
    %6 = arith.subf %4, %5 : vector<128xf32>
    %7 = math.exp %6 : vector<128xf32>
    %8 = vector.shape_cast %7 : vector<128xf32> to vector<1x1x128xf32>
    %c0_3 = arith.constant 0 : index
    %c0_4 = arith.constant 0 : index
    %c0_5 = arith.constant 0 : index
    %9 = vector.load %arg2[%c0_3, %c0_4, %c0_5] : memref<1x1x128xf32, #tpu.memory_space<vmem>>, vector<1x1x128xf32>
    tpu.vector_store %arg2[%c0_3, %c0_4, %c0_5], %8 {strides = array<i32>} : memref<1x1x128xf32, #tpu.memory_space<vmem>>, vector<1x1x128xf32>,
    return
  }
  func.func @transform_0(%arg0: i32) -> (i32, i32) {
    %c0_i32 = arith.constant 0 : i32
    %c0_i32_0 = arith.constant 0 : i32
    return %arg0, %c0_i32 : i32, i32
  }
  func.func @transform_1(%arg0: i32) -> (i32, i32, i32) {
    %c0_i32 = arith.constant 0 : i32
    %c0_i32_0 = arith.constant 0 : i32
    %c0_i32_1 = arith.constant 0 : i32
    return %arg0, %c0_i32, %c0_i32_0 : i32, i32, i32
  }
}

</mosaic_0001>

<llo_original>
// kernel: tpu_custom_call.1
$region0: #{tpu_custom_call.1}
  #allocation0 [shape = 'u32[]', space=smem, size = 0x4, offset = 0x4, fixed_abs, tag = 'smem constant byte address 0x4 - core index']
  #allocation1 [shape = 'u32[144,128]{1,0:T(1,128)}', space=vmem, size = 0x12000, scoped, tag = 'internal scratch']
  %s0 = inlined_call_operand.vmem [shape: f32[128,16], index: 0, kind: input, shape index: {}]
  %s1 = inlined_call_operand.hbm [shape: f32[1,1,128], index: 1, kind: output, shape index: {}]
  %s2 = sld [smem:[#allocation0]]
  $region14: #{tpu_custom_call.1} parent=0
    _
  %s4 = ssub.s32 1, %s2
  %s5 = scalar_select 0, %s4, %s2
  $region1: #{tpu_custom_call.1} parent=0
    #allocation2 [shape = 'u8[512]{0}', space=vmem, size = 0x400, scoped, tag = 'output window, operand 0, single buffered']
    #allocation3 [shape = 's32[1]{0}', space=sflag, size = 0x4, scoped, tag = 'scoped memory for tpu_custom_call.1']
    %6 = vsyncpa [#allocation3], 0
    // Predicated region
    $region2: #{tpu_custom_call.1} parent=1 // pred_check
      _
    $region3: #{tpu_custom_call.1} parent=1 // pred_check_branch
      %8 = sbr.rel (0) target = $region5
    $region4: #{tpu_custom_call.1} parent=1 // pred_region
      _
    $region5: #{tpu_custom_call.1} parent=1 // pred_fallthru
      _
    %v9 = vld [vmem:[%s0] sm:$0xff]
    %v10 = vld [vmem:[%s0 + $0x8] sm:$0xff]
    %v11 = vld [vmem:[%s0 + $0x10] sm:$0xff]
    %v12 = vld [vmem:[%s0 + $0x18] sm:$0xff]
    %v13 = vld [vmem:[%s0 + $0x20] sm:$0xff]
    %v14 = vld [vmem:[%s0 + $0x28] sm:$0xff]
    %v15 = vld [vmem:[%s0 + $0x30] sm:$0xff]
    %v16 = vld [vmem:[%s0 + $0x38] sm:$0xff]
    %v17 = vld [vmem:[%s0 + $0x40] sm:$0xff]
    %v18 = vld [vmem:[%s0 + $0x48] sm:$0xff]
    %v19 = vld [vmem:[%s0 + $0x50] sm:$0xff]
    %v20 = vld [vmem:[%s0 + $0x58] sm:$0xff]
    %v21 = vld [vmem:[%s0 + $0x60] sm:$0xff]
    %v22 = vld [vmem:[%s0 + $0x68] sm:$0xff]
    %v23 = vld [vmem:[%s0 + $0x70] sm:$0xff]
    %v24 = vld [vmem:[%s0 + $0x78] sm:$0xff]
    %v25 = vmul.f32 %v9, %v9
    %v26 = vmul.f32 %v10, %v10
    %v27 = vmul.f32 %v11, %v11
    %v28 = vmul.f32 %v12, %v12
    %v29 = vmul.f32 %v13, %v13
    %v30 = vmul.f32 %v14, %v14
    %v31 = vmul.f32 %v15, %v15
    %v32 = vmul.f32 %v16, %v16
    %v33 = vmul.f32 %v17, %v17
    %v34 = vmul.f32 %v18, %v18
    %v35 = vmul.f32 %v19, %v19
    %v36 = vmul.f32 %v20, %v20
    %v37 = vmul.f32 %v21, %v21
    %v38 = vmul.f32 %v22, %v22
    %v39 = vmul.f32 %v23, %v23
    %v40 = vmul.f32 %v24, %v24
    %vm41 = vcmask 130048
    %v42 = vsel %vm41, %v25, 0.0
    %43 = vadd.xlane.f32.xlu0 %v42
    %v44 = vpop.xlane.xlu0 %43
    %v45 = vsel %vm41, %v26, 0.0
    %46 = vadd.xlane.f32.xlu0 %v45
    %v47 = vpop.xlane.xlu0 %46
    %v48 = vsel %vm41, %v27, 0.0
    %49 = vadd.xlane.f32.xlu0 %v48
    %v50 = vpop.xlane.xlu0 %49
    %v51 = vsel %vm41, %v28, 0.0
    %52 = vadd.xlane.f32.xlu0 %v51
    %v53 = vpop.xlane.xlu0 %52
    %v54 = vsel %vm41, %v29, 0.0
    %55 = vadd.xlane.f32.xlu0 %v54
    %v56 = vpop.xlane.xlu0 %55
    %v57 = vsel %vm41, %v30, 0.0
    %58 = vadd.xlane.f32.xlu0 %v57
    %v59 = vpop.xlane.xlu0 %58
    %v60 = vsel %vm41, %v31, 0.0
    %61 = vadd.xlane.f32.xlu0 %v60
    %v62 = vpop.xlane.xlu0 %61
    %v63 = vsel %vm41, %v32, 0.0
    %64 = vadd.xlane.f32.xlu0 %v63
    %v65 = vpop.xlane.xlu0 %64
    %v66 = vsel %vm41, %v33, 0.0
    %67 = vadd.xlane.f32.xlu0 %v66
    %v68 = vpop.xlane.xlu0 %67
    %v69 = vsel %vm41, %v34, 0.0
    %70 = vadd.xlane.f32.xlu0 %v69
    %v71 = vpop.xlane.xlu0 %70
    %v72 = vsel %vm41, %v35, 0.0
    %73 = vadd.xlane.f32.xlu0 %v72
    %v74 = vpop.xlane.xlu0 %73
    %v75 = vsel %vm41, %v36, 0.0
    %76 = vadd.xlane.f32.xlu0 %v75
    %v77 = vpop.xlane.xlu0 %76
    %v78 = vsel %vm41, %v37, 0.0
    %79 = vadd.xlane.f32.xlu0 %v78
    %v80 = vpop.xlane.xlu0 %79
    %v81 = vsel %vm41, %v38, 0.0
    %82 = vadd.xlane.f32.xlu0 %v81
    %v83 = vpop.xlane.xlu0 %82
    %v84 = vsel %vm41, %v39, 0.0
    %85 = vadd.xlane.f32.xlu0 %v84
    %v86 = vpop.xlane.xlu0 %85
    %v87 = vsel %vm41, %v40, 0.0
    %88 = vadd.xlane.f32.xlu0 %v87
    %v89 = vpop.xlane.xlu0 %88
    %v90 = vmul.f32 %v44, -0.5
    %v91 = vmul.f32 %v47, -0.5
    %v92 = vmul.f32 %v50, -0.5
    %v93 = vmul.f32 %v53, -0.5
    %v94 = vmul.f32 %v56, -0.5
    %v95 = vmul.f32 %v59, -0.5
    %v96 = vmul.f32 %v62, -0.5
    %v97 = vmul.f32 %v65, -0.5
    %v98 = vmul.f32 %v68, -0.5
    %v99 = vmul.f32 %v71, -0.5
    %v100 = vmul.f32 %v74, -0.5
    %v101 = vmul.f32 %v77, -0.5
    %v102 = vmul.f32 %v80, -0.5
    %v103 = vmul.f32 %v83, -0.5
    %v104 = vmul.f32 %v86, -0.5
    %v105 = vmul.f32 %v89, -0.5
    %v106 = vsub.f32 %v90, 14.703016
    %v107 = vsub.f32 %v91, 14.703016
    %v108 = vsub.f32 %v92, 14.703016
    %v109 = vsub.f32 %v93, 14.703016
    %v110 = vsub.f32 %v94, 14.703016
    %v111 = vsub.f32 %v95, 14.703016
    %v112 = vsub.f32 %v96, 14.703016
    %v113 = vsub.f32 %v97, 14.703016
    %v114 = vsub.f32 %v98, 14.703016
    %v115 = vsub.f32 %v99, 14.703016
    %v116 = vsub.f32 %v100, 14.703016
    %v117 = vsub.f32 %v101, 14.703016
    %v118 = vsub.f32 %v102, 14.703016
    %v119 = vsub.f32 %v103, 14.703016
    %v120 = vsub.f32 %v104, 14.703016
    %v121 = vsub.f32 %v105, 14.703016
    %v122 = vmul.f32 %v106, 1.442695
    %v123 = vpow.pop %v122
    %v124 = vmul.f32 %v107, 1.442695
    %v125 = vpow.pop %v124
    %v126 = vmul.f32 %v108, 1.442695
    %v127 = vpow.pop %v126
    %v128 = vmul.f32 %v109, 1.442695
    %v129 = vpow.pop %v128
    %v130 = vmul.f32 %v110, 1.442695
    %v131 = vpow.pop %v130
    %v132 = vmul.f32 %v111, 1.442695
    %v133 = vpow.pop %v132
    %v134 = vmul.f32 %v112, 1.442695
    %v135 = vpow.pop %v134
    %v136 = vmul.f32 %v113, 1.442695
    %v137 = vpow.pop %v136
    %v138 = vmul.f32 %v114, 1.442695
    %v139 = vpow.pop %v138
    %v140 = vmul.f32 %v115, 1.442695
    %v141 = vpow.pop %v140
    %v142 = vmul.f32 %v116, 1.442695
    %v143 = vpow.pop %v142
    %v144 = vmul.f32 %v117, 1.442695
    %v145 = vpow.pop %v144
    %v146 = vmul.f32 %v118, 1.442695
    %v147 = vpow.pop %v146
    %v148 = vmul.f32 %v119, 1.442695
    %v149 = vpow.pop %v148
    %v150 = vmul.f32 %v120, 1.442695
    %v151 = vpow.pop %v150
    %v152 = vmul.f32 %v121, 1.442695
    %v153 = vpow.pop %v152
    %v170 = vlaneseq
    %v171 = vand.u32 %v170, 127
    %v172 = vlaneseq
    %v173 = vshrl.u32 %v172, 7
    %v174 = vsub.s32 %v171, %v173
    %v175 = vrot.slane %v123, %v174
    %v176 = vadd.s32 %v171, 4294967288
    %v177 = vlaneseq
    %v178 = vshrl.u32 %v177, 7
    %v179 = vsub.s32 %v176, %v178
    %v180 = vrot.slane %v125, %v179
    %vm181 = vcmask 130112
    %v182 = vsel %vm181, %v180, %v175
    %v183 = vadd.s32 %v171, 4294967280
    %v184 = vlaneseq
    %v185 = vshrl.u32 %v184, 7
    %v186 = vsub.s32 %v183, %v185
    %v187 = vrot.slane %v127, %v186
    %vm188 = vcmask 195712
    %v189 = vsel %vm188, %v187, %v182
    %v190 = vadd.s32 %v171, 4294967272
    %v191 = vlaneseq
    %v192 = vshrl.u32 %v191, 7
    %v193 = vsub.s32 %v190, %v192
    %v194 = vrot.slane %v129, %v193
    %vm195 = vcmask 261312
    %v196 = vsel %vm195, %v194, %v189
    %v197 = vadd.s32 %v171, 4294967264
    %v198 = vlaneseq
    %v199 = vshrl.u32 %v198, 7
    %v200 = vsub.s32 %v197, %v199
    %v201 = vrot.slane %v131, %v200
    %vm202 = vcmask 326912
    %v203 = vsel %vm202, %v201, %v196
    %v204 = vadd.s32 %v171, 4294967256
    %v205 = vlaneseq
    %v206 = vshrl.u32 %v205, 7
    %v207 = vsub.s32 %v204, %v206
    %v208 = vrot.slane %v133, %v207
    %vm209 = vcmask 392512
    %v210 = vsel %vm209, %v208, %v203
    %v211 = vadd.s32 %v171, 4294967248
    %v212 = vlaneseq
    %v213 = vshrl.u32 %v212, 7
    %v214 = vsub.s32 %v211, %v213
    %v215 = vrot.slane %v135, %v214
    %vm216 = vcmask 458112
    %v217 = vsel %vm216, %v215, %v210
    %v218 = vadd.s32 %v171, 4294967240
    %v219 = vlaneseq
    %v220 = vshrl.u32 %v219, 7
    %v221 = vsub.s32 %v218, %v220
    %v222 = vrot.slane %v137, %v221
    %vm223 = vcmask 523712
    %v224 = vsel %vm223, %v222, %v217
    %v225 = vadd.s32 %v171, 4294967232
    %v226 = vlaneseq
    %v227 = vshrl.u32 %v226, 7
    %v228 = vsub.s32 %v225, %v227
    %v229 = vrot.slane %v139, %v228
    %vm230 = vcmask 589312
    %v231 = vsel %vm230, %v229, %v224
    %v232 = vadd.s32 %v171, 4294967224
    %v233 = vlaneseq
    %v234 = vshrl.u32 %v233, 7
    %v235 = vsub.s32 %v232, %v234
    %v236 = vrot.slane %v141, %v235
    %vm237 = vcmask 654912
    %v238 = vsel %vm237, %v236, %v231
    %v239 = vadd.s32 %v171, 4294967216
    %v240 = vlaneseq
    %v241 = vshrl.u32 %v240, 7
    %v242 = vsub.s32 %v239, %v241
    %v243 = vrot.slane %v143, %v242
    %vm244 = vcmask 720512
    %v245 = vsel %vm244, %v243, %v238
    %v246 = vadd.s32 %v171, 4294967208
    %v247 = vlaneseq
    %v248 = vshrl.u32 %v247, 7
    %v249 = vsub.s32 %v246, %v248
    %v250 = vrot.slane %v145, %v249
    %vm251 = vcmask 786112
    %v252 = vsel %vm251, %v250, %v245
    %v253 = vadd.s32 %v171, 4294967200
    %v254 = vlaneseq
    %v255 = vshrl.u32 %v254, 7
    %v256 = vsub.s32 %v253, %v255
    %v257 = vrot.slane %v147, %v256
    %vm258 = vcmask 851712
    %v259 = vsel %vm258, %v257, %v252
    %v260 = vadd.s32 %v171, 4294967192
    %v261 = vlaneseq
    %v262 = vshrl.u32 %v261, 7
    %v263 = vsub.s32 %v260, %v262
    %v264 = vrot.slane %v149, %v263
    %vm265 = vcmask 917312
    %v266 = vsel %vm265, %v264, %v259
    %v267 = vadd.s32 %v171, 4294967184
    %v268 = vlaneseq
    %v269 = vshrl.u32 %v268, 7
    %v270 = vsub.s32 %v267, %v269
    %v271 = vrot.slane %v151, %v270
    %vm272 = vcmask 982912
    %v273 = vsel %vm272, %v271, %v266
    %v274 = vadd.s32 %v171, 4294967176
    %v275 = vlaneseq
    %v276 = vshrl.u32 %v275, 7
    %v277 = vsub.s32 %v274, %v276
    %v278 = vrot.slane %v153, %v277
    %vm279 = vcmask 1048512
    %v280 = vsel %vm279, %v278, %v273
    %282 = vst [vmem:[#allocation2] sm:$0x1] %v280
    // Predicated region
    $region6: #{tpu_custom_call.1} parent=1 // pred_check
      _
    $region7: #{tpu_custom_call.1} parent=1 // pred_check_branch
      %284 = sbr.rel (0) target = $region9
    $region8: #{tpu_custom_call.1} parent=1 // pred_region
      %s286 = ssub.s32 16, 16
      %287 = vsyncadd [#allocation3], %s286
      %s289 = sshll.u32 [#allocation2], 4
      %s290 = int_to_ptr.vmem [resolvable:$true] %s289
      %292 = dma.vmem_to_hbm [thread:$0]  %s290, 16, %s1, [#allocation3]
    $region9: #{tpu_custom_call.1} parent=1 // pred_fallthru
      _
    // Predicated region
    $region10: #{tpu_custom_call.1} parent=1 // pred_check
      _
    $region11: #{tpu_custom_call.1} parent=1 // pred_check_branch
      %294 = sbr.rel (0) target = $region13
    $region12: #{tpu_custom_call.1} parent=1 // pred_region
      %295 = dma.done [#allocation3], 16
    $region13: #{tpu_custom_call.1} parent=1 // pred_fallthru
      _
    %296 = vsyncpa [#allocation3], 1

</llo_original>
